<compile_context>
chip_gen: v5e
topology: v5e:2x2
jax: 0.10.0
libtpu: 0.0.40
codegen_flags: <defaults>
</compile_context>

<pallas_src>
import functools

import jax
import jax.numpy as jnp
from jax.experimental import pallas as pl
from jax.experimental.pallas import tpu as pltpu


def _cdiv(a, b):
    return -(-a // b)


def _round_up(x, m):
    return (x + m - 1) // m * m


def _finalize(acc_ref, b_ref, o_ref, *, k, tn):
    # Bias add + group-max over the k groups, all in f32, 128-aligned slices.
    y = acc_ref[...] + b_ref[...]                       # (tm, k*tn)
    m = y[:, 0:tn]
    for l in range(1, k):                               # k is tiny & static
        m = jnp.maximum(m, y[:, l * tn:(l + 1) * tn])
    o_ref[...] = m.astype(o_ref.dtype)


def _maxout_kernel_eval(x_ref, w_ref, b_ref, o_ref, acc_ref, *, k, tn, tk):
    kk = pl.program_id(2)

    @pl.when(kk == 0)
    def _():
        acc_ref[...] = jnp.zeros_like(acc_ref)

    off = pl.multiple_of(kk * tk, 128)
    acc_ref[...] += jnp.dot(x_ref[:, pl.ds(off, tk)], w_ref[...],
                            preferred_element_type=jnp.float32)

    @pl.when(kk == pl.num_programs(2) - 1)
    def _():
        _finalize(acc_ref, b_ref, o_ref, k=k, tn=tn)


def _maxout_kernel_train(mask_ref, x_ref, w_ref, b_ref, o_ref, xs_ref, acc_ref,
                         *, k, tn, tk, keep_thresh, scale):
    j = pl.program_id(1)
    kk = pl.program_id(2)
    off = pl.multiple_of(kk * tk, 128)

    @pl.when(kk == 0)
    def _():
        acc_ref[...] = jnp.zeros_like(acc_ref)

    # Dropout hoist: the x/mask blocks are invariant across the OF-tile axis
    # (j), so the compare+scale+cast runs only at j == 0; the masked bf16
    # activations are cached in VMEM scratch and reused by every later OF tile.
    @pl.when(j == 0)
    def _():
        keep = mask_ref[:, pl.ds(off, tk)] >= jnp.uint8(keep_thresh)
        xf = x_ref[:, pl.ds(off, tk)].astype(jnp.float32) * jnp.float32(scale)
        xs_ref[:, pl.ds(off, tk)] = jnp.where(
            keep, xf, jnp.float32(0.0)).astype(jnp.bfloat16)

    acc_ref[...] += jnp.dot(xs_ref[:, pl.ds(off, tk)], w_ref[...],
                            preferred_element_type=jnp.float32)

    @pl.when(kk == pl.num_programs(2) - 1)
    def _():
        _finalize(acc_ref, b_ref, o_ref, k=k, tn=tn)


def _est_vmem_bytes(tm, tn, tk, k, if_pad, training):
    x_b = 2 * tm * if_pad * 2                        # bf16 x, double-buffered
    m_b = 2 * tm * if_pad * 1 if training else 0     # u8 mask, double-buffered
    xs_b = tm * if_pad * 2 if training else 0        # masked bf16 scratch
    w_b = 2 * tk * k * tn * 2                        # bf16 W tile
    b_b = 2 * k * tn * 4
    acc_b = tm * k * tn * 4
    o_b = 2 * tm * tn * 4
    return x_b + m_b + xs_b + w_b + b_b + acc_b + o_b


def maxout_forward(x, W, b, *, k, p=0.5, training=False, dropout_mask=None,
                   tm_max=512, tn=256, tk=512,
                   vmem_budget_bytes=48 * 1024 * 1024):
    """Fused Dropout(p) -> Linear(IF, OF*k) -> max over k groups.

    x: (B, IF) f32, W: (OF*k, IF) f32 (PyTorch nn.Linear layout), b: (OF*k,).
    dropout_mask: (B, IF) uint8 random bytes (required when training=True);
      an element is kept iff its byte >= round(p*256), survivors scaled by
      1/(1-p) (keep-prob bias <= 1/512 vs exact p).
    Returns (B, OF) f32.
    """
    if not (0.0 <= p < 1.0):
        raise ValueError("dropout p must be in [0, 1)")   # guard 1/(1-p)
    B, IF = x.shape
    OFk, IF_w = W.shape
    assert IF_w == IF and OFk % k == 0
    OF = OFk // k

    # ---- tile sizes --------------------------------------------------------
    # Lane-dense output tiles (tn % 128 == 0), 128-aligned reduction tiles,
    # batch tile multiple of 32 (bf16 (16,128) + u8 (32,128) sublane tiling).
    tn = min(tn, _round_up(OF, 128))
    tk = min(tk, _round_up(IF, 128))
    OF_pad = _round_up(OF, tn)
    IF_pad = _round_up(IF, tk)
    n_ot, n_kt = OF_pad // tn, IF_pad // tk

    n_bt = _cdiv(B, tm_max)
    if n_bt == 1 and B > 256:
        n_bt = 2          # expose >=2 "parallel" batch tiles for v7x megacore
    tm = _round_up(_cdiv(B, n_bt), 32)        # hug B: no pathological padding
    while tm > 32 and _est_vmem_bytes(tm, tn, tk, k, IF_pad,
                                      training) > vmem_budget_bytes:
        tm = _round_up(_cdiv(tm, 2), 32)      # fit conservative v7x-safe budget
    # TODO(synk): for extremely large IF the (tm, IF_pad) bf16 x block itself
    # dominates VMEM; tiling x/mask along IF as well would bound it fully.
    n_bt = _cdiv(B, tm)
    B_pad = n_bt * tm

    # ---- operand packing ---------------------------------------------------
    # Pack weights so output tile j sees one contiguous (IF_pad, k*tn) slab:
    #   wp[:, j*k*tn + l*tn + oc] = W[(j*tn + oc)*k + l, :]   (torch group order)
    wk = jnp.transpose(W.reshape(OF, k, IF), (1, 2, 0))            # (k, IF, OF)
    wk = jnp.pad(wk, ((0, 0), (0, IF_pad - IF), (0, OF_pad - OF)))
    wp = jnp.transpose(wk.reshape(k, IF_pad, n_ot, tn), (1, 2, 0, 3))
    wp = wp.reshape(IF_pad, n_ot * k * tn).astype(jnp.bfloat16)

    bk = jnp.pad(b.reshape(OF, k).T, ((0, 0), (0, OF_pad - OF)))   # (k, OF_pad)
    bp = jnp.transpose(bk.reshape(k, n_ot, tn), (1, 0, 2))
    bp = bp.reshape(1, n_ot * k * tn).astype(jnp.float32)

    # bf16 activations halve x-side DMA/VMEM (MXU consumes bf16 anyway).
    xp = jnp.pad(x, ((0, B_pad - B), (0, IF_pad - IF))).astype(jnp.bfloat16)

    x_spec = pl.BlockSpec((tm, IF_pad), lambda i, j, kk: (i, 0))
    w_spec = pl.BlockSpec((tk, k * tn), lambda i, j, kk: (kk, j))
    b_spec = pl.BlockSpec((1, k * tn), lambda i, j, kk: (0, j))
    o_spec = pl.BlockSpec((tm, tn), lambda i, j, kk: (i, j))

    est_vmem = _est_vmem_bytes(tm, tn, tk, k, IF_pad, training)
    cparams = pltpu.CompilerParams(
        # The dropout hoist (pl.when j == 0) and the accumulator axis (kk)
        # must run sequentially per core; only the batch axis is sharded
        # across TensorCores.
        dimension_semantics=("parallel", "arbitrary", "arbitrary"),
        vmem_limit_bytes=min(max(int(est_vmem * 1.3) + (4 << 20), 16 << 20),
                             100 << 20))

    x_bytes = B_pad * IF_pad * (3 if training else 2)
    cost = pl.CostEstimate(
        flops=2 * B_pad * IF_pad * OF_pad * k,
        transcendentals=0,
        bytes_accessed=x_bytes + n_bt * (wp.size * 2 + bp.size * 4)
        + B_pad * OF_pad * 4)

    grid = (n_bt, n_ot, n_kt)
    acc_scratch = pltpu.VMEM((tm, k * tn), jnp.float32)

    if training:
        assert dropout_mask is not None and dropout_mask.shape == (B, IF)
        # TODO(synk): RNG stream differs from PyTorch's dropout RNG; the mask
        # is supplied externally (uint8 bytes) so tests stay reproducible.
        mp = jnp.pad(dropout_mask.astype(jnp.uint8),
                     ((0, B_pad - B), (0, IF_pad - IF)))
        keep_thresh = min(int(round(p * 256.0)), 255)
        kernel = functools.partial(_maxout_kernel_train, k=k, tn=tn, tk=tk,
                                   keep_thresh=keep_thresh,
                                   scale=1.0 / (1.0 - p))
        in_specs = [pl.BlockSpec((tm, IF_pad), lambda i, j, kk: (i, 0)),
                    x_spec, w_spec, b_spec]
        args = (mp, xp, wp, bp)
        scratch_shapes = [pltpu.VMEM((tm, IF_pad), jnp.bfloat16), acc_scratch]
    else:
        kernel = functools.partial(_maxout_kernel_eval, k=k, tn=tn, tk=tk)
        in_specs = [x_spec, w_spec, b_spec]
        args = (xp, wp, bp)
        scratch_shapes = [acc_scratch]

    out = pl.pallas_call(
        kernel,
        out_shape=jax.ShapeDtypeStruct((B_pad, OF_pad), jnp.float32),
        grid=grid,
        in_specs=in_specs,
        out_specs=o_spec,
        scratch_shapes=scratch_shapes,
        compiler_params=cparams,
        cost_estimate=cost,
    )(*args)
    return out[:B, :OF]


if __name__ == "__main__":
    B, IN_F, OUT_F, K, P = 8, 32, 16, 2, 0.5

    key = jax.random.PRNGKey(0)
    kx, kw, kb, kd = jax.random.split(key, 4)
    bound = 1.0 / float(IN_F) ** 0.5
    x = jax.random.normal(kx, (B, IN_F), jnp.float32)
    W = jax.random.uniform(kw, (OUT_F * K, IN_F), jnp.float32,
                           minval=-bound, maxval=bound)
    b = jax.random.uniform(kb, (OUT_F * K,), jnp.float32,
                           minval=-bound, maxval=bound)

    def reference(x_in, W, b, k):
        # Mirrors the kernel's MXU precision: bf16 operands, f32 accumulation.
        xb = x_in.astype(jnp.bfloat16).astype(jnp.float32)
        Wb = W.astype(jnp.bfloat16).astype(jnp.float32)
        y = xb @ Wb.T + b
        return jnp.max(y.reshape(y.shape[0], y.shape[1] // k, k), axis=-1)

    # Eval mode: dropout is identity.
    out_eval = jax.block_until_ready(
        maxout_forward(x, W, b, k=K, p=P, training=False))
    assert out_eval.shape == (B, OUT_F)
    assert jnp.allclose(out_eval, reference(x, W, b, K), atol=3e-3, rtol=3e-3), \
        "eval mismatch vs reference"

    # Training mode: dropout mask comes from externally supplied uint8 bytes,
    # so the exact same mask is reproducible in the plain-JAX reference.
    mask = jax.random.bits(kd, (B, IN_F), dtype=jnp.uint8)
    out_train = jax.block_until_ready(
        maxout_forward(x, W, b, k=K, p=P, training=True, dropout_mask=mask))
    thresh = jnp.uint8(min(int(round(P * 256.0)), 255))
    # Mirror the kernel path: bf16 x -> f32 scale+mask -> bf16 MXU operand.
    x_bf = x.astype(jnp.bfloat16).astype(jnp.float32)
    x_drop = jnp.where(mask >= thresh, x_bf * (1.0 / (1.0 - P)), 0.0)
    x_drop = x_drop.astype(jnp.bfloat16).astype(jnp.float32)
    assert out_train.shape == (B, OUT_F)
    assert jnp.allclose(out_train, reference(x_drop, W, b, K),
                        atol=3e-3, rtol=3e-3), "train mismatch vs reference"

    print("KERNEL_OK")
</pallas_src>

<mosaic_0001>
module attributes {stable_mosaic.version = 11 : i64} {
  func.func @_maxout_kernel_eval(%arg0: i32, %arg1: i32, %arg2: i32, %arg3: memref<32x128xbf16, #tpu.memory_space<vmem>>, %arg4: memref<128x256xbf16, #tpu.memory_space<vmem>>, %arg5: memref<1x256xf32, #tpu.memory_space<vmem>>, %arg6: memref<32x128xf32, #tpu.memory_space<vmem>>, %arg7: memref<32x256xf32, #tpu.memory_space<vmem>>) attributes {dimension_semantics = [#tpu.dimension_semantics<parallel>, #tpu.dimension_semantics<arbitrary>, #tpu.dimension_semantics<arbitrary>], iteration_bounds = array<i64: 1, 1, 1>, scalar_prefetch = 0 : i64, scratch_operands = 1 : i64, tpu.core_type = #tpu.core_type<tc>, window_params = [{transform_indices = @transform_0, window_bounds = array<i64: 32, 128>}, {transform_indices = @transform_1, window_bounds = array<i64: 128, 256>}, {transform_indices = @transform_2, window_bounds = array<i64: 1, 256>}, {transform_indices = @transform_3, window_bounds = array<i64: 32, 128>}]} {
    %c0_i32 = arith.constant 0 : i32
    %0 = arith.cmpi eq, %arg2, %c0_i32 : i32
    %1 = arith.extui %0 : i1 to i32
    %c0_i32_0 = arith.constant 0 : i32
    %2 = arith.cmpi ne, %1, %c0_i32_0 : i32
    scf.if %2 {
      %cst_9 = arith.constant 0.000000e+00 : f32
      %15 = vector.broadcast %cst_9 : f32 to vector<32x256xf32>
      %c0_10 = arith.constant 0 : index
      %c0_11 = arith.constant 0 : index
      %16 = vector.load %arg7[%c0_10, %c0_11] : memref<32x256xf32, #tpu.memory_space<vmem>>, vector<32x256xf32>
      tpu.vector_store %arg7[%c0_10, %c0_11], %15 {strides = array<i32>} : memref<32x256xf32, #tpu.memory_space<vmem>>, vector<32x256xf32>,
    } else {
    }
    %c128_i32 = arith.constant 128 : i32
    %3 = arith.muli %arg2, %c128_i32 : i32
    %4 = tpu.assume_multiple %3, 128 : i32
    %c0 = arith.constant 0 : index
    %c0_1 = arith.constant 0 : index
    %5 = vector.load %arg7[%c0, %c0_1] : memref<32x256xf32, #tpu.memory_space<vmem>>, vector<32x256xf32>
    %c0_2 = arith.constant 0 : index
    %6 = arith.index_cast %4 : i32 to index
    %7 = vector.load %arg3[%c0_2, %6] : memref<32x128xbf16, #tpu.memory_space<vmem>>, vector<32x128xbf16>
    %c0_3 = arith.constant 0 : index
    %c0_4 = arith.constant 0 : index
    %8 = vector.load %arg4[%c0_3, %c0_4] : memref<128x256xbf16, #tpu.memory_space<vmem>>, vector<128x256xbf16>
    %cst = arith.constant dense<0.000000e+00> : vector<32x256xf32>
    %9 = tpu.matmul %7, %8, %cst {dimension_numbers = #tpu.dot_dimension_numbers<[1], [0], [0], [1], [0, 0, 1, 1], [], []>} : vector<32x128xbf16>, vector<128x256xbf16>, vector<32x256xf32> -> vector<32x256xf32>
    %10 = arith.addf %5, %9 : vector<32x256xf32>
    %c0_5 = arith.constant 0 : index
    %c0_6 = arith.constant 0 : index
    %11 = vector.load %arg7[%c0_5, %c0_6] : memref<32x256xf32, #tpu.memory_space<vmem>>, vector<32x256xf32>
    tpu.vector_store %arg7[%c0_5, %c0_6], %10 {strides = array<i32>} : memref<32x256xf32, #tpu.memory_space<vmem>>, vector<32x256xf32>,
    %c0_i32_7 = arith.constant 0 : i32
    %12 = arith.cmpi eq, %arg2, %c0_i32_7 : i32
    %13 = arith.extui %12 : i1 to i32
    %c0_i32_8 = arith.constant 0 : i32
    %14 = arith.cmpi ne, %13, %c0_i32_8 : i32
    scf.if %14 {
      %c0_9 = arith.constant 0 : index
      %c0_10 = arith.constant 0 : index
      %15 = vector.load %arg7[%c0_9, %c0_10] : memref<32x256xf32, #tpu.memory_space<vmem>>, vector<32x256xf32>
      %c0_11 = arith.constant 0 : index
      %c0_12 = arith.constant 0 : index
      %16 = vector.load %arg5[%c0_11, %c0_12] : memref<1x256xf32, #tpu.memory_space<vmem>>, vector<1x256xf32>
      %17 = vector.broadcast %16 : vector<1x256xf32> to vector<32x256xf32>
      %18 = arith.addf %15, %17 : vector<32x256xf32>
      %19 = vector.extract_strided_slice %18 {offsets = [0, 0], sizes = [32, 128], strides = [1, 1]} : vector<32x256xf32> to vector<32x128xf32>
      %20 = vector.extract_strided_slice %18 {offsets = [0, 128], sizes = [32, 128], strides = [1, 1]} : vector<32x256xf32> to vector<32x128xf32>
      %21 = arith.maximumf %19, %20 : vector<32x128xf32>
      %c0_13 = arith.constant 0 : index
      %c0_14 = arith.constant 0 : index
      %22 = vector.load %arg6[%c0_13, %c0_14] : memref<32x128xf32, #tpu.memory_space<vmem>>, vector<32x128xf32>
      tpu.vector_store %arg6[%c0_13, %c0_14], %21 {strides = array<i32>} : memref<32x128xf32, #tpu.memory_space<vmem>>, vector<32x128xf32>,
    } else {
    }
    return
  }
  func.func @transform_0(%arg0: i32, %arg1: i32, %arg2: i32) -> (i32, i32) {
    %c0_i32 = arith.constant 0 : i32
    %c0_i32_0 = arith.constant 0 : i32
    return %arg0, %c0_i32 : i32, i32
  }
  func.func @transform_1(%arg0: i32, %arg1: i32, %arg2: i32) -> (i32, i32) {
    %c0_i32 = arith.constant 0 : i32
    return %arg2, %arg1 : i32, i32
  }
  func.func @transform_2(%arg0: i32, %arg1: i32, %arg2: i32) -> (i32, i32) {
    %c0_i32 = arith.constant 0 : i32
    %c0_i32_0 = arith.constant 0 : i32
    return %c0_i32, %arg1 : i32, i32
  }
  func.func @transform_3(%arg0: i32, %arg1: i32, %arg2: i32) -> (i32, i32) {
    %c0_i32 = arith.constant 0 : i32
    return %arg0, %arg1 : i32, i32
  }
}

</mosaic_0001>

<llo_original>
// kernel: tpu_custom_call.1
$region0: #{tpu_custom_call.1}
  #allocation0 [shape = 'u32[]', space=smem, size = 0x4, offset = 0x4, fixed_abs, tag = 'smem constant byte address 0x4 - core index']
  #allocation1 [shape = 'u32[72,128]{1,0:T(1,128)}', space=vmem, size = 0x9000, scoped, tag = 'internal scratch']
  #allocation2 [shape = 'f32[32,256]{1,0:T(8,128)}', space=vmem, size = 0x8000, scoped, tag = 'scratch operand']
  %s0 = inlined_call_operand.hbm [shape: bf16[32,128], index: 0, kind: input, shape index: {}]
  %s1 = inlined_call_operand.hbm [shape: bf16[128,256], index: 1, kind: input, shape index: {}]
  %s2 = inlined_call_operand.hbm [shape: f32[1,256], index: 2, kind: input, shape index: {}]
  %s3 = inlined_call_operand.hbm [shape: f32[32,128], index: 3, kind: output, shape index: {}]
  %s4 = sld [smem:[#allocation0]]
  $region42: #{tpu_custom_call.1} parent=0
    _
  %s6 = ssub.s32 1, %s4
  %s7 = scalar_select 0, %s6, %s4
  $region1: #{tpu_custom_call.1} parent=0
    #allocation3 [shape = 'u8[8192]{0}', space=vmem, size = 0x2000, scoped, tag = 'input window, operand 0, single buffered']
    #allocation4 [shape = 's32[1]{0}', space=sflag, size = 0x4, scoped, tag = 'scoped memory for tpu_custom_call.1']
    #allocation5 [shape = 's32[1]{0}', space=sflag, size = 0x4, scoped, tag = 'scoped memory for tpu_custom_call.1']
    #allocation6 [shape = 'u8[65536]{0}', space=vmem, size = 0x10000, scoped, tag = 'input window, operand 1, single buffered']
    #allocation7 [shape = 's32[1]{0}', space=sflag, size = 0x4, scoped, tag = 'scoped memory for tpu_custom_call.1']
    #allocation8 [shape = 'u8[1024]{0}', space=vmem, size = 0x400, scoped, tag = 'input window, operand 2, single buffered']
    #allocation9 [shape = 'u8[16384]{0}', space=vmem, size = 0x4000, scoped, tag = 'output window, operand 0, single buffered']
    %8 = vsyncpa [#allocation4], 0
    %9 = vsyncpa [#allocation7], 0
    %10 = vsyncpa [#allocation5], 0
    // Predicated region
    $region2: #{tpu_custom_call.1} parent=1 // pred_check
      _
    $region3: #{tpu_custom_call.1} parent=1 // pred_check_branch
      %12 = sbr.rel (0) target = $region5
    $region4: #{tpu_custom_call.1} parent=1 // pred_region
      %14 = vsyncadd [#allocation4], 0
      %s15 = sshll.u32 %s0, 4
      %s16 = int_to_ptr.hbm [resolvable:$true] %s15
      %s17 = sshll.u32 [#allocation3], 4
      %s18 = int_to_ptr.vmem [resolvable:$true] %s17
      %23 = dma.hbm_to_vmem [thread:$0]  %s16, 256, %s18, [#allocation4], 64, 64, 4
    $region5: #{tpu_custom_call.1} parent=1 // pred_fallthru
      _
    // Predicated region
    $region6: #{tpu_custom_call.1} parent=1 // pred_check
      _
    $region7: #{tpu_custom_call.1} parent=1 // pred_check_branch
      %25 = sbr.rel (0) target = $region9
    $region8: #{tpu_custom_call.1} parent=1 // pred_region
      %27 = vsyncadd [#allocation7], 0
      %s28 = sshll.u32 %s1, 4
      %s29 = int_to_ptr.hbm [resolvable:$true] %s28
      %s30 = sshll.u32 [#allocation6], 4
      %s31 = int_to_ptr.vmem [resolvable:$true] %s30
      %36 = dma.hbm_to_vmem [thread:$0]  %s29, 2048, %s31, [#allocation7], 128, 128, 8
    $region9: #{tpu_custom_call.1} parent=1 // pred_fallthru
      _
    // Predicated region
    $region10: #{tpu_custom_call.1} parent=1 // pred_check
      _
    $region11: #{tpu_custom_call.1} parent=1 // pred_check_branch
      %38 = sbr.rel (0) target = $region13
    $region12: #{tpu_custom_call.1} parent=1 // pred_region
      %40 = vsyncadd [#allocation7], 0
      %s42 = sshll.u32 %s2, 4
      %s43 = int_to_ptr.hbm [resolvable:$true] %s42
      %s44 = sshll.u32 [#allocation8], 4
      %s45 = int_to_ptr.vmem [resolvable:$true] %s44
      %47 = dma.hbm_to_vmem [thread:$0]  %s43, 32, %s45, [#allocation7]
    $region13: #{tpu_custom_call.1} parent=1 // pred_fallthru
      _
    // Predicated region
    $region14: #{tpu_custom_call.1} parent=1 // pred_check
      _
    $region15: #{tpu_custom_call.1} parent=1 // pred_check_branch
      %49 = sbr.rel (0) target = $region17
    $region16: #{tpu_custom_call.1} parent=1 // pred_region
      %51 = dma.done [#allocation4], 256
    $region17: #{tpu_custom_call.1} parent=1 // pred_fallthru
      _
    // Predicated region
    $region18: #{tpu_custom_call.1} parent=1 // pred_check
      _
    $region19: #{tpu_custom_call.1} parent=1 // pred_check_branch
      %53 = sbr.rel (0) target = $region21
    $region20: #{tpu_custom_call.1} parent=1 // pred_region
      %55 = dma.done [#allocation7], 2048
    $region21: #{tpu_custom_call.1} parent=1 // pred_fallthru
      _
    // Predicated region
    $region22: #{tpu_custom_call.1} parent=1 // pred_check
      _
    $region23: #{tpu_custom_call.1} parent=1 // pred_check_branch
      %57 = sbr.rel (0) target = $region25
    $region24: #{tpu_custom_call.1} parent=1 // pred_region
      %59 = dma.done [#allocation7], 32
    $region25: #{tpu_custom_call.1} parent=1 // pred_fallthru
      _
    %p60 = scmp.eq.s32.totalorder 0, 0
    // Predicated region
    $region26: #{tpu_custom_call.1} parent=1 // pred_check
      %p61 = pneg %p60
    $region27: #{tpu_custom_call.1} parent=1 // pred_check_branch
      %63 = sbr.rel (%p61) target = $region29
    $region28: #{tpu_custom_call.1} parent=1 // pred_region
      %64 = vst [vmem:[#allocation2] sm:$0xff] 0.0
      %65 = vst [vmem:[#allocation2 + $0x8] sm:$0xff] 0.0
      %66 = vst [vmem:[#allocation2 + $0x10] sm:$0xff] 0.0
      %67 = vst [vmem:[#allocation2 + $0x18] sm:$0xff] 0.0
      %68 = vst [vmem:[#allocation2 + $0x20] sm:$0xff] 0.0
      %69 = vst [vmem:[#allocation2 + $0x28] sm:$0xff] 0.0
      %70 = vst [vmem:[#allocation2 + $0x30] sm:$0xff] 0.0
      %71 = vst [vmem:[#allocation2 + $0x38] sm:$0xff] 0.0
    $region29: #{tpu_custom_call.1} parent=1 // pred_fallthru
      _
    %s72 = smul.u32 0, 128
    %v73 = vld [vmem:[#allocation2] sm:$0xff]
    %v74 = vld [vmem:[#allocation2 + $0x8] sm:$0xff]
    %v75 = vld [vmem:[#allocation2 + $0x10] sm:$0xff]
    %v76 = vld [vmem:[#allocation2 + $0x18] sm:$0xff]
    %v77 = vld [vmem:[#allocation2 + $0x20] sm:$0xff]
    %v78 = vld [vmem:[#allocation2 + $0x28] sm:$0xff]
    %v79 = vld [vmem:[#allocation2 + $0x30] sm:$0xff]
    %v80 = vld [vmem:[#allocation2 + $0x38] sm:$0xff]
    %s81 = sshra.s32 %s72, 7
    %s82 = sand.u32 %s72, 127
    %s83 = smul.addr %s81, 4
    %s84 = scalar_lea.vmem [#allocation3], %s83
    %v85 = vld [vmem:[%s84] sm:$0xf]
    %v86 = vld [vmem:[%s84 + $0x4] sm:$0xf]
    %v87 = vld [vmem:[%s84 + $0x8] sm:$0xf]
    %v88 = vld [vmem:[%s84 + $0xc] sm:$0xf]
    %v89 = vld [vmem:[#allocation6] sm:$0xff]
    %v90 = vld [vmem:[#allocation6 + $0x8] sm:$0xff]
    %v91 = vld [vmem:[#allocation6 + $0x10] sm:$0xff]
    %v92 = vld [vmem:[#allocation6 + $0x18] sm:$0xff]
    %v93 = vld [vmem:[#allocation6 + $0x20] sm:$0xff]
    %v94 = vld [vmem:[#allocation6 + $0x28] sm:$0xff]
    %v95 = vld [vmem:[#allocation6 + $0x30] sm:$0xff]
    %v96 = vld [vmem:[#allocation6 + $0x38] sm:$0xff]
    %v97 = vld [vmem:[#allocation6 + $0x40] sm:$0xff]
    %v98 = vld [vmem:[#allocation6 + $0x48] sm:$0xff]
    %v99 = vld [vmem:[#allocation6 + $0x50] sm:$0xff]
    %v100 = vld [vmem:[#allocation6 + $0x58] sm:$0xff]
    %v101 = vld [vmem:[#allocation6 + $0x60] sm:$0xff]
    %v102 = vld [vmem:[#allocation6 + $0x68] sm:$0xff]
    %v103 = vld [vmem:[#allocation6 + $0x70] sm:$0xff]
    %v104 = vld [vmem:[#allocation6 + $0x78] sm:$0xff]
    %v109 = vunpack.c.l.b16 %v85
    %v110 = vunpack.c.l.b16 %v86
    %v111 = vunpack.c.l.b16 %v87
    %v112 = vunpack.c.l.b16 %v88
    %v113 = vpack.c.b16 %v110, %v109
    %v114 = vpack.c.b16 %v112, %v111
    %v133 = vunpack.c.l.b16 %v89
    %v134 = vunpack.c.h.b16 %v89
    %v135 = vunpack.c.l.b16 %v90
    %v136 = vunpack.c.h.b16 %v90
    %v137 = vunpack.c.l.b16 %v91
    %v138 = vunpack.c.h.b16 %v91
    %v139 = vunpack.c.l.b16 %v92
    %v140 = vunpack.c.h.b16 %v92
    %v141 = vunpack.c.l.b16 %v93
    %v142 = vunpack.c.h.b16 %v93
    %v143 = vunpack.c.l.b16 %v94
    %v144 = vunpack.c.h.b16 %v94
    %v145 = vunpack.c.l.b16 %v95
    %v146 = vunpack.c.h.b16 %v95
    %v147 = vunpack.c.l.b16 %v96
    %v148 = vunpack.c.h.b16 %v96
    %v149 = vunpack.c.l.b16 %v97
    %v150 = vunpack.c.h.b16 %v97
    %v151 = vunpack.c.l.b16 %v98
    %v152 = vunpack.c.h.b16 %v98
    %v153 = vunpack.c.l.b16 %v99
    %v154 = vunpack.c.h.b16 %v99
    %v155 = vunpack.c.l.b16 %v100
    %v156 = vunpack.c.h.b16 %v100
    %v157 = vunpack.c.l.b16 %v101
    %v158 = vunpack.c.h.b16 %v101
    %v159 = vunpack.c.l.b16 %v102
    %v160 = vunpack.c.h.b16 %v102
    %v161 = vunpack.c.l.b16 %v103
    %v162 = vunpack.c.h.b16 %v103
    %v163 = vunpack.c.l.b16 %v104
    %v164 = vunpack.c.h.b16 %v104
    %v165 = vpack.c.b16 %v135, %v133
    %v166 = vpack.c.b16 %v136, %v134
    %v167 = vpack.c.b16 %v139, %v137
    %v168 = vpack.c.b16 %v140, %v138
    %v169 = vpack.c.b16 %v143, %v141
    %v170 = vpack.c.b16 %v144, %v142
    %v171 = vpack.c.b16 %v147, %v145
    %v172 = vpack.c.b16 %v148, %v146
    %v173 = vpack.c.b16 %v151, %v149
    %v174 = vpack.c.b16 %v152, %v150
    %v175 = vpack.c.b16 %v155, %v153
    %v176 = vpack.c.b16 %v156, %v154
    %v177 = vpack.c.b16 %v159, %v157
    %v178 = vpack.c.b16 %v160, %v158
    %v179 = vpack.c.b16 %v163, %v161
    %v180 = vpack.c.b16 %v164, %v162
    %197 = vmatpush.bf16.msra.mxu0 %v179
    %198 = vmatpush.bf16.msra.mxu0 %v177
    %199 = vmatpush.bf16.msra.mxu0 %v175
    %200 = vmatpush.bf16.msra.mxu0 %v173
    %201 = vmatpush.bf16.msra.mxu0 %v171
    %202 = vmatpush.bf16.msra.mxu0 %v169
    %203 = vmatpush.bf16.msra.mxu0 %v167
    %204 = vmatpush.bf16.msra.mxu0 %v165
    %205 = vmatmul.bf16.gmra.mxu0 %v113
    %v206 = vpop.f32.mrf.mxu0
    %v207 = vadd.f32 0.0, %v206
    %v208 = vpop.f32.mrf.mxu0
    %v209 = vadd.f32 0.0, %v208
    %210 = vmatmul.bf16.gmra.mxu0 %v114
    %v211 = vpop.f32.mrf.mxu0
    %v212 = vadd.f32 0.0, %v211
    %v213 = vpop.f32.mrf.mxu0
    %v214 = vadd.f32 0.0, %v213
    %215 = vdwg.mxu0
    %216 = vmatpush.bf16.msra.mxu0 %v180
    %217 = vmatpush.bf16.msra.mxu0 %v178
    %218 = vmatpush.bf16.msra.mxu0 %v176
    %219 = vmatpush.bf16.msra.mxu0 %v174
    %220 = vmatpush.bf16.msra.mxu0 %v172
    %221 = vmatpush.bf16.msra.mxu0 %v170
    %222 = vmatpush.bf16.msra.mxu0 %v168
    %223 = vmatpush.bf16.msra.mxu0 %v166
    %224 = vmatmul.bf16.gmra.mxu0 %v113
    %v225 = vpop.f32.mrf.mxu0
    %v226 = vadd.f32 0.0, %v225
    %v227 = vpop.f32.mrf.mxu0
    %v228 = vadd.f32 0.0, %v227
    %229 = vmatmul.bf16.gmra.mxu0 %v114
    %v230 = vpop.f32.mrf.mxu0
    %v231 = vadd.f32 0.0, %v230
    %v232 = vpop.f32.mrf.mxu0
    %v233 = vadd.f32 0.0, %v232
    %234 = vdwg.mxu0
    %v235 = vadd.f32 %v73, %v207
    %v236 = vadd.f32 %v74, %v226
    %v237 = vadd.f32 %v75, %v209
    %v238 = vadd.f32 %v76, %v228
    %v239 = vadd.f32 %v77, %v212
    %v240 = vadd.f32 %v78, %v231
    %v241 = vadd.f32 %v79, %v214
    %v242 = vadd.f32 %v80, %v233
    %243 = vst [vmem:[#allocation2] sm:$0xff] %v235
    %244 = vst [vmem:[#allocation2 + $0x8] sm:$0xff] %v236
    %245 = vst [vmem:[#allocation2 + $0x10] sm:$0xff] %v237
    %246 = vst [vmem:[#allocation2 + $0x18] sm:$0xff] %v238
    %247 = vst [vmem:[#allocation2 + $0x20] sm:$0xff] %v239
    %248 = vst [vmem:[#allocation2 + $0x28] sm:$0xff] %v240
    %249 = vst [vmem:[#allocation2 + $0x30] sm:$0xff] %v241
    %250 = vst [vmem:[#allocation2 + $0x38] sm:$0xff] %v242
    // Predicated region
    $region30: #{tpu_custom_call.1} parent=1 // pred_check
      %p251 = pneg %p60
    $region31: #{tpu_custom_call.1} parent=1 // pred_check_branch
      %253 = sbr.rel (%p251) target = $region33
    $region32: #{tpu_custom_call.1} parent=1 // pred_region
      %v254 = vld [vmem:[#allocation2] sm:$0xff]
      %v255 = vld [vmem:[#allocation2 + $0x8] sm:$0xff]
      %v256 = vld [vmem:[#allocation2 + $0x10] sm:$0xff]
      %v257 = vld [vmem:[#allocation2 + $0x18] sm:$0xff]
      %v258 = vld [vmem:[#allocation2 + $0x20] sm:$0xff]
      %v259 = vld [vmem:[#allocation2 + $0x28] sm:$0xff]
      %v260 = vld [vmem:[#allocation2 + $0x30] sm:$0xff]
      %v261 = vld [vmem:[#allocation2 + $0x38] sm:$0xff]
      %v262 = vld [vmem:[#allocation8] sm:$0x3]
      %v264 = vperm.slane %v262, 0
      %v265 = vperm.slane %v262, 1
      %v268 = vadd.f32 %v254, %v264
      %v269 = vadd.f32 %v255, %v265
      %v270 = vadd.f32 %v256, %v264
      %v271 = vadd.f32 %v257, %v265
      %v272 = vadd.f32 %v258, %v264
      %v273 = vadd.f32 %v259, %v265
      %v274 = vadd.f32 %v260, %v264
      %v275 = vadd.f32 %v261, %v265
      %v276 = vmax.f32 %v268, %v269
      %v277 = vmax.f32 %v270, %v271
      %v278 = vmax.f32 %v272, %v273
      %v279 = vmax.f32 %v274, %v275
      %280 = vst [vmem:[#allocation9] sm:$0xff] %v276
      %281 = vst [vmem:[#allocation9 + $0x8] sm:$0xff] %v277
      %282 = vst [vmem:[#allocation9 + $0x10] sm:$0xff] %v278
      %283 = vst [vmem:[#allocation9 + $0x18] sm:$0xff] %v279
    $region33: #{tpu_custom_call.1} parent=1 // pred_fallthru
      _
    // Predicated region
    $region34: #{tpu_custom_call.1} parent=1 // pred_check
      _
    $region35: #{tpu_custom_call.1} parent=1 // pred_check_branch
      %285 = sbr.rel (0) target = $region37
    $region36: #{tpu_custom_call.1} parent=1 // pred_region
      %287 = vsyncadd [#allocation5], 0
      %s288 = sshll.u32 [#allocation9], 4
      %s289 = int_to_ptr.vmem [resolvable:$true] %s288
      %s290 = sshll.u32 %s3, 4
      %s291 = int_to_ptr.hbm [resolvable:$true] %s290
      %296 = dma.vmem_to_hbm [thread:$0]  %s289, 512, %s291, [#allocation5], 128, 128, 8
    $region37: #{tpu_custom_call.1} parent=1 // pred_fallthru
      _
    // Predicated region
    $region38: #{tpu_custom_call.1} parent=1 // pred_check
      _
    $region39: #{tpu_custom_call.1} parent=1 // pred_check_branch
      %298 = sbr.rel (0) target = $region41
    $region40: #{tpu_custom_call.1} parent=1 // pred_region
      %300 = dma.done [#allocation5], 512
    $region41: #{tpu_custom_call.1} parent=1 // pred_fallthru
      _
    %301 = vsyncpa [#allocation4], 1
    %302 = vsyncpa [#allocation7], 1
    %303 = vsyncpa [#allocation5], 1

</llo_original>
